<compile_context>
chip_gen: v6e
topology: v6e:2x2x1
jax: 0.10.0
libtpu: 0.0.40
codegen_flags: <defaults>
</compile_context>

<pallas_src>
import jax
import jax.numpy as jnp
from jax.experimental import pallas as pl
from jax.experimental.pallas import tpu as pltpu

_SUBLANE = 8


def _round_up(x, m):
    return ((x + m - 1) // m) * m


def _mlp_kernel(x_ref, w1_ref, b1_ref, w2_ref, b2_ref, o_ref):
    # x tile: (TB, F) in its HBM dtype; cast to bf16 only for the MXU operands.
    x = x_ref[...].astype(jnp.bfloat16)
    # Layer 1: Linear(F -> H) on the MXU, f32 accumulation; bias + ReLU in f32.
    h = jnp.dot(x, w1_ref[...], preferred_element_type=jnp.float32)
    h = jnp.maximum(h + b1_ref[...], 0.0)
    # Layer 2: Linear(H -> C); only the dot operands are bf16.
    o = jnp.dot(h.astype(jnp.bfloat16), w2_ref[...],
                preferred_element_type=jnp.float32)
    # C equals the full last dim of the output -> direct (possibly masked)
    # store; vst slack is enormous here so the mask cost is irrelevant.
    o_ref[...] = (o + b2_ref[...]).astype(o_ref.dtype)


def _vmem_budget():
    """(streamed-tile VMEM budget bytes, max batch tile) per TPU generation."""
    try:
        cap = int(getattr(pltpu.get_tpu_info(), "vmem_capacity_bytes", 64 << 20))
    except Exception:
        cap = 64 << 20  # assume the smallest (v7x per-core) if query unavailable
    if cap >= (100 << 20):          # v5e / v6e: 128 MiB VMEM -> bigger tiles,
        return 20 << 20, 8192       # fewer ~0.35 us grid steps.
    return 10 << 20, 4096           # v7x: 64 MiB physical, 32 MiB scoped.


def _choose_batch_tile(batch, in_features, hidden, classes,
                       budget_bytes, max_tile):
    """Largest sublane-aligned batch tile fitting a conservative VMEM budget."""
    per_row = (2 * in_features * 4      # double-buffered streamed x tile (f32)
               + 2 * classes * 4        # double-buffered out tile (f32)
               + in_features * 2        # bf16 cast of x
               + hidden * 4 + hidden * 2  # h (f32) + bf16 copy for 2nd dot
               + classes * 4)           # pre-store f32 logits
    tb = budget_bytes // max(per_row, 1)
    # Load-balance: aim for >= 8 grid steps (>= ~4 per TC on v7x's 2 cores).
    tb_balance = _round_up(max(1, -(-batch // 8)), _SUBLANE)
    tb = min(tb, max_tile, tb_balance)
    tb = max(_SUBLANE, (tb // _SUBLANE) * _SUBLANE)
    return int(tb)


def _pallas_forward(x, w1b, b1r, w2b, b2r):
    B, F = x.shape
    H = w1b.shape[1]
    C = w2b.shape[1]

    budget, max_tile = _vmem_budget()
    # Resident weights/biases (worst case: default 2-deep buffering).
    weight_bytes = F * H * 2 + H * 4 + H * C * 2 + C * 4
    budget = max(budget - 2 * weight_bytes, 1 << 20)
    TB = _choose_batch_tile(B, F, H, C, budget, max_tile)
    n_tiles = pl.cdiv(B, TB)           # partial last tile handled by Pallas

    def call(single_buffer_weights):
        kw = {"pipeline_mode": pl.Buffered(1)} if single_buffer_weights else {}
        pinned = lambda shape: pl.BlockSpec(shape, lambda i: (0, 0), **kw)
        return pl.pallas_call(
            _mlp_kernel,
            out_shape=jax.ShapeDtypeStruct((B, C), jnp.float32),
            grid=(n_tiles,),
            in_specs=[
                pl.BlockSpec((TB, F), lambda i: (i, 0)),   # streamed x tiles
                pinned((F, H)),                            # VMEM-resident weights
                pinned((1, H)),
                pinned((H, C)),
                pinned((1, C)),
            ],
            out_specs=pl.BlockSpec((TB, C), lambda i: (i, 0)),
            compiler_params=pltpu.CompilerParams(
                dimension_semantics=("parallel",),   # megacore-split batch grid
                vmem_limit_bytes=32 << 20,
            ),
        )(x, w1b, b1r, w2b, b2r)

    try:
        # Weights never change across the grid -> single-buffer them (halves
        # their VMEM footprint; matters for large F on v7x's 64 MiB VMEM).
        return call(True)
    except Exception:
        # This jax build does not accept pipeline_mode here; default buffering
        # is already covered by the budget accounting above.
        return call(False)


def prepare_params(w1, b1, w2, b2):
    """One-time parameter prep (do at init, NOT per forward call).

    bf16 matmul operands; f32 biases reshaped to (1, N) for the epilogue.
    """
    return (w1.astype(jnp.bfloat16),
            b1.astype(jnp.float32).reshape(1, -1),
            w2.astype(jnp.bfloat16),
            b2.astype(jnp.float32).reshape(1, -1))


def rem_series_classifier(x, params, *, min_pallas_batch=1024,
                          force_pallas=False):
    """Forward pass of REM_Series_Classifier (eval mode: Dropout = identity).

    x: (B, F); params = prepare_params(w1, b1, w2, b2) with
    w1: (F, F//2), b1: (F//2,), w2: (F//2, C), b2: (C,)
    (weights stored (in, out), matching torch's x @ W.T with W (out, in)).
    Returns f32 logits of shape (B, C).
    """
    w1b, b1r, w2b, b2r = params
    if force_pallas or x.shape[0] >= min_pallas_batch:
        return _pallas_forward(x, w1b, b1r, w2b, b2r)
    # Tiny batches: a single fused XLA op beats pallas_call fixed overhead.
    h = jnp.maximum(
        jnp.dot(x.astype(jnp.bfloat16), w1b,
                preferred_element_type=jnp.float32) + b1r, 0.0)
    return jnp.dot(h.astype(jnp.bfloat16), w2b,
                   preferred_element_type=jnp.float32) + b2r


def init_params(key, in_features, n_classes, dtype=jnp.float32):
    """Deterministic init mirroring nn.Linear default (uniform +-1/sqrt(fan_in))."""
    hidden = in_features // 2
    k1, k2, k3, k4 = jax.random.split(key, 4)
    bound1 = 1.0 / (in_features ** 0.5)
    bound2 = 1.0 / (hidden ** 0.5)
    w1 = jax.random.uniform(k1, (in_features, hidden), dtype, -bound1, bound1)
    b1 = jax.random.uniform(k2, (hidden,), dtype, -bound1, bound1)
    w2 = jax.random.uniform(k3, (hidden, n_classes), dtype, -bound2, bound2)
    b2 = jax.random.uniform(k4, (n_classes,), dtype, -bound2, bound2)
    return w1, b1, w2, b2


if __name__ == "__main__":
    key = jax.random.PRNGKey(0)
    in_features, n_classes = 32, 8
    kx, kp, kx2 = jax.random.split(key, 3)
    w1, b1, w2, b2 = init_params(kp, in_features, n_classes)
    params = prepare_params(w1, b1, w2, b2)        # one-time pad/cast

    # --- Pallas path (modest batch so the tiled kernel actually runs) ---
    batch = 256
    x = jax.random.normal(kx, (batch, in_features), jnp.float32)
    out = rem_series_classifier(x, params, force_pallas=True)
    out = jax.block_until_ready(out)
    assert out.shape == (batch, n_classes)
    assert out.dtype == jnp.float32

    # Reference with the same bf16 operand cast / f32 accumulation.
    xb = x.astype(jnp.bfloat16)
    w1b, b1r, w2b, b2r = params
    h_ref = jnp.maximum(
        jnp.dot(xb, w1b, preferred_element_type=jnp.float32) + b1r, 0.0)
    ref = jnp.dot(h_ref.astype(jnp.bfloat16), w2b,
                  preferred_element_type=jnp.float32) + b2r
    assert jnp.allclose(out, ref, atol=2e-3, rtol=2e-3)

    # Loose check against pure-f32 math (difference = bf16 quantisation only).
    ref_f32 = jnp.maximum(x @ w1 + b1, 0.0) @ w2 + b2
    assert jnp.allclose(out, ref_f32, atol=5e-2, rtol=5e-2)

    # --- Non-divisible batch exercises the partial last tile path ---
    x_odd = jax.random.normal(kx2, (137, in_features), jnp.float32)
    out_odd = jax.block_until_ready(
        rem_series_classifier(x_odd, params, force_pallas=True))
    ref_odd = jnp.maximum(x_odd @ w1 + b1, 0.0) @ w2 + b2
    assert out_odd.shape == (137, n_classes)
    assert jnp.allclose(out_odd, ref_odd, atol=5e-2, rtol=5e-2)

    # --- Small-batch dispatch falls back to fused XLA (no Pallas overhead) ---
    x_small = jax.random.normal(kx2, (2, in_features), jnp.float32)
    out_small = jax.block_until_ready(rem_series_classifier(x_small, params))
    ref_small = jnp.maximum(x_small @ w1 + b1, 0.0) @ w2 + b2
    assert out_small.shape == (2, n_classes)
    assert jnp.allclose(out_small, ref_small, atol=5e-2, rtol=5e-2)

    print("KERNEL_OK")
</pallas_src>

<mosaic_0001>
module attributes {stable_mosaic.version = 11 : i64} {
  func.func @_mlp_kernel(%arg0: i32, %arg1: memref<32x32xf32, #tpu.memory_space<vmem>>, %arg2: memref<32x16xbf16, #tpu.memory_space<vmem>>, %arg3: memref<1x16xf32, #tpu.memory_space<vmem>>, %arg4: memref<16x8xbf16, #tpu.memory_space<vmem>>, %arg5: memref<1x8xf32, #tpu.memory_space<vmem>>, %arg6: memref<32x8xf32, #tpu.memory_space<vmem>>) attributes {dimension_semantics = [#tpu.dimension_semantics<parallel>], iteration_bounds = array<i64: 8>, scalar_prefetch = 0 : i64, scratch_operands = 0 : i64, tpu.core_type = #tpu.core_type<tc>, window_params = [{transform_indices = @transform_0, window_bounds = array<i64: 32, 32>}, {pipeline_mode = #tpu.pipeline_mode<synchronous>, transform_indices = @transform_1, window_bounds = array<i64: 32, 16>}, {pipeline_mode = #tpu.pipeline_mode<synchronous>, transform_indices = @transform_2, window_bounds = array<i64: 1, 16>}, {pipeline_mode = #tpu.pipeline_mode<synchronous>, transform_indices = @transform_3, window_bounds = array<i64: 16, 8>}, {pipeline_mode = #tpu.pipeline_mode<synchronous>, transform_indices = @transform_4, window_bounds = array<i64: 1, 8>}, {transform_indices = @transform_5, window_bounds = array<i64: 32, 8>}]} {
    %c0 = arith.constant 0 : index
    %c0_0 = arith.constant 0 : index
    %0 = vector.load %arg1[%c0, %c0_0] : memref<32x32xf32, #tpu.memory_space<vmem>>, vector<32x32xf32>
    %1 = arith.truncf %0 : vector<32x32xf32> to vector<32x32xbf16>
    %c0_1 = arith.constant 0 : index
    %c0_2 = arith.constant 0 : index
    %2 = vector.load %arg2[%c0_1, %c0_2] : memref<32x16xbf16, #tpu.memory_space<vmem>>, vector<32x16xbf16>
    %cst = arith.constant dense<0.000000e+00> : vector<32x16xf32>
    %3 = tpu.matmul %1, %2, %cst {dimension_numbers = #tpu.dot_dimension_numbers<[1], [0], [0], [1], [0, 0, 1, 1], [], []>} : vector<32x32xbf16>, vector<32x16xbf16>, vector<32x16xf32> -> vector<32x16xf32>
    %c0_3 = arith.constant 0 : index
    %c0_4 = arith.constant 0 : index
    %4 = vector.load %arg3[%c0_3, %c0_4] : memref<1x16xf32, #tpu.memory_space<vmem>>, vector<1x16xf32>
    %5 = vector.broadcast %4 : vector<1x16xf32> to vector<32x16xf32>
    %6 = arith.addf %3, %5 : vector<32x16xf32>
    %cst_5 = arith.constant 0.000000e+00 : f32
    %7 = vector.broadcast %cst_5 : f32 to vector<32x16xf32>
    %8 = arith.maximumf %6, %7 : vector<32x16xf32>
    %9 = arith.truncf %8 : vector<32x16xf32> to vector<32x16xbf16>
    %c0_6 = arith.constant 0 : index
    %c0_7 = arith.constant 0 : index
    %10 = vector.load %arg4[%c0_6, %c0_7] : memref<16x8xbf16, #tpu.memory_space<vmem>>, vector<16x8xbf16>
    %cst_8 = arith.constant dense<0.000000e+00> : vector<32x8xf32>
    %11 = tpu.matmul %9, %10, %cst_8 {dimension_numbers = #tpu.dot_dimension_numbers<[1], [0], [0], [1], [0, 0, 1, 1], [], []>} : vector<32x16xbf16>, vector<16x8xbf16>, vector<32x8xf32> -> vector<32x8xf32>
    %c0_9 = arith.constant 0 : index
    %c0_10 = arith.constant 0 : index
    %12 = vector.load %arg5[%c0_9, %c0_10] : memref<1x8xf32, #tpu.memory_space<vmem>>, vector<1x8xf32>
    %13 = vector.broadcast %12 : vector<1x8xf32> to vector<32x8xf32>
    %14 = arith.addf %11, %13 : vector<32x8xf32>
    %c0_11 = arith.constant 0 : index
    %c0_12 = arith.constant 0 : index
    %15 = vector.load %arg6[%c0_11, %c0_12] : memref<32x8xf32, #tpu.memory_space<vmem>>, vector<32x8xf32>
    tpu.vector_store %arg6[%c0_11, %c0_12], %14 {strides = array<i32>} : memref<32x8xf32, #tpu.memory_space<vmem>>, vector<32x8xf32>,
    return
  }
  func.func @transform_0(%arg0: i32) -> (i32, i32) {
    %c0_i32 = arith.constant 0 : i32
    %c0_i32_0 = arith.constant 0 : i32
    return %arg0, %c0_i32 : i32, i32
  }
  func.func @transform_1(%arg0: i32) -> (i32, i32) {
    %c0_i32 = arith.constant 0 : i32
    %c0_i32_0 = arith.constant 0 : i32
    %c0_i32_1 = arith.constant 0 : i32
    return %c0_i32, %c0_i32_0 : i32, i32
  }
  func.func @transform_2(%arg0: i32) -> (i32, i32) {
    %c0_i32 = arith.constant 0 : i32
    %c0_i32_0 = arith.constant 0 : i32
    %c0_i32_1 = arith.constant 0 : i32
    return %c0_i32, %c0_i32_0 : i32, i32
  }
  func.func @transform_3(%arg0: i32) -> (i32, i32) {
    %c0_i32 = arith.constant 0 : i32
    %c0_i32_0 = arith.constant 0 : i32
    %c0_i32_1 = arith.constant 0 : i32
    return %c0_i32, %c0_i32_0 : i32, i32
  }
  func.func @transform_4(%arg0: i32) -> (i32, i32) {
    %c0_i32 = arith.constant 0 : i32
    %c0_i32_0 = arith.constant 0 : i32
    %c0_i32_1 = arith.constant 0 : i32
    return %c0_i32, %c0_i32_0 : i32, i32
  }
  func.func @transform_5(%arg0: i32) -> (i32, i32) {
    %c0_i32 = arith.constant 0 : i32
    %c0_i32_0 = arith.constant 0 : i32
    return %arg0, %c0_i32 : i32, i32
  }
}

module attributes {stable_mosaic.version = 11 : i64} {
  func.func @_mlp_kernel(%arg0: i32, %arg1: memref<32x32xf32, #tpu.memory_space<vmem>>, %arg2: memref<32x16xbf16, #tpu.memory_space<vmem>>, %arg3: memref<1x16xf32, #tpu.memory_space<vmem>>, %arg4: memref<16x8xbf16, #tpu.memory_space<vmem>>, %arg5: memref<1x8xf32, #tpu.memory_space<vmem>>, %arg6: memref<32x8xf32, #tpu.memory_space<vmem>>) attributes {dimension_semantics = [#tpu.dimension_semantics<parallel>], iteration_bounds = array<i64: 8>, scalar_prefetch = 0 : i64, scratch_operands = 0 : i64, tpu.core_type = #tpu.core_type<tc>, window_params = [{transform_indices = @transform_0, window_bounds = array<i64: 32, 32>}, {pipeline_mode = #tpu.pipeline_mode<synchronous>, transform_indices = @transform_1, window_bounds = array<i64: 32, 16>}, {pipeline_mode = #tpu.pipeline_mode<synchronous>, transform_indices = @transform_2, window_bounds = array<i64: 1, 16>}, {pipeline_mode = #tpu.pipeline_mode<synchronous>, transform_indices = @transform_3, window_bounds = array<i64: 16, 8>}, {pipeline_mode = #tpu.pipeline_mode<synchronous>, transform_indices = @transform_4, window_bounds = array<i64: 1, 8>}, {transform_indices = @transform_5, window_bounds = array<i64: 32, 8>}]} {
    %c0 = arith.constant 0 : index
    %c0_0 = arith.constant 0 : index
    %0 = vector.load %arg1[%c0, %c0_0] : memref<32x32xf32, #tpu.memory_space<vmem>>, vector<32x32xf32>
    %1 = arith.truncf %0 : vector<32x32xf32> to vector<32x32xbf16>
    %c0_1 = arith.constant 0 : index
    %c0_2 = arith.constant 0 : index
    %2 = vector.load %arg2[%c0_1, %c0_2] : memref<32x16xbf16, #tpu.memory_space<vmem>>, vector<32x16xbf16>
    %cst = arith.constant dense<0.000000e+00> : vector<32x16xf32>
    %3 = tpu.matmul %1, %2, %cst {dimension_numbers = #tpu.dot_dimension_numbers<[1], [0], [0], [1], [0, 0, 1, 1], [], []>} : vector<32x32xbf16>, vector<32x16xbf16>, vector<32x16xf32> -> vector<32x16xf32>
    %c0_3 = arith.constant 0 : index
    %c0_4 = arith.constant 0 : index
    %4 = vector.load %arg3[%c0_3, %c0_4] : memref<1x16xf32, #tpu.memory_space<vmem>>, vector<1x16xf32>
    %5 = vector.broadcast %4 : vector<1x16xf32> to vector<32x16xf32>
    %6 = arith.addf %3, %5 : vector<32x16xf32>
    %cst_5 = arith.constant 0.000000e+00 : f32
    %7 = vector.broadcast %cst_5 : f32 to vector<32x16xf32>
    %8 = arith.maximumf %6, %7 : vector<32x16xf32>
    %9 = arith.truncf %8 : vector<32x16xf32> to vector<32x16xbf16>
    %c0_6 = arith.constant 0 : index
    %c0_7 = arith.constant 0 : index
    %10 = vector.load %arg4[%c0_6, %c0_7] : memref<16x8xbf16, #tpu.memory_space<vmem>>, vector<16x8xbf16>
    %cst_8 = arith.constant dense<0.000000e+00> : vector<32x8xf32>
    %11 = tpu.matmul %9, %10, %cst_8 {dimension_numbers = #tpu.dot_dimension_numbers<[1], [0], [0], [1], [0, 0, 1, 1], [], []>} : vector<32x16xbf16>, vector<16x8xbf16>, vector<32x8xf32> -> vector<32x8xf32>
    %c0_9 = arith.constant 0 : index
    %c0_10 = arith.constant 0 : index
    %12 = vector.load %arg5[%c0_9, %c0_10] : memref<1x8xf32, #tpu.memory_space<vmem>>, vector<1x8xf32>
    %13 = vector.broadcast %12 : vector<1x8xf32> to vector<32x8xf32>
    %14 = arith.addf %11, %13 : vector<32x8xf32>
    %c0_11 = arith.constant 0 : index
    %c0_12 = arith.constant 0 : index
    %15 = vector.load %arg6[%c0_11, %c0_12] : memref<32x8xf32, #tpu.memory_space<vmem>>, vector<32x8xf32>
    tpu.vector_store %arg6[%c0_11, %c0_12], %14 {strides = array<i32>} : memref<32x8xf32, #tpu.memory_space<vmem>>, vector<32x8xf32>,
    return
  }
  func.func @transform_0(%arg0: i32) -> (i32, i32) {
    %c0_i32 = arith.constant 0 : i32
    %c0_i32_0 = arith.constant 0 : i32
    return %arg0, %c0_i32 : i32, i32
  }
  func.func @transform_1(%arg0: i32) -> (i32, i32) {
    %c0_i32 = arith.constant 0 : i32
    %c0_i32_0 = arith.constant 0 : i32
    %c0_i32_1 = arith.constant 0 : i32
    return %c0_i32, %c0_i32_0 : i32, i32
  }
  func.func @transform_2(%arg0: i32) -> (i32, i32) {
    %c0_i32 = arith.constant 0 : i32
    %c0_i32_0 = arith.constant 0 : i32
    %c0_i32_1 = arith.constant 0 : i32
    return %c0_i32, %c0_i32_0 : i32, i32
  }
  func.func @transform_3(%arg0: i32) -> (i32, i32) {
    %c0_i32 = arith.constant 0 : i32
    %c0_i32_0 = arith.constant 0 : i32
    %c0_i32_1 = arith.constant 0 : i32
    return %c0_i32, %c0_i32_0 : i32, i32
  }
  func.func @transform_4(%arg0: i32) -> (i32, i32) {
    %c0_i32 = arith.constant 0 : i32
    %c0_i32_0 = arith.constant 0 : i32
    %c0_i32_1 = arith.constant 0 : i32
    return %c0_i32, %c0_i32_0 : i32, i32
  }
  func.func @transform_5(%arg0: i32) -> (i32, i32) {
    %c0_i32 = arith.constant 0 : i32
    %c0_i32_0 = arith.constant 0 : i32
    return %arg0, %c0_i32 : i32, i32
  }
}

</mosaic_0001>

<llo_original>
// kernel: tpu_custom_call.1
$region0: #{tpu_custom_call.1}
  #allocation0 [shape = 'u32[]', space=smem, size = 0x4, offset = 0x4, fixed_abs, tag = 'smem constant byte address 0x4 - core index']
  #allocation1 [shape = 'u32[144,128]{1,0:T(1,128)}', space=vmem, size = 0x12000, scoped, tag = 'internal scratch']
  %s0 = inlined_call_operand.vmem [shape: f32[256,32], index: 0, kind: input, shape index: {}]
  %s1 = inlined_call_operand.vmem [shape: bf16[32,16], index: 1, kind: input, shape index: {}]
  %s2 = inlined_call_operand.vmem [shape: f32[1,16], index: 2, kind: input, shape index: {}]
  %s3 = inlined_call_operand.vmem [shape: bf16[16,8], index: 3, kind: input, shape index: {}]
  %s4 = inlined_call_operand.vmem [shape: f32[1,8], index: 4, kind: input, shape index: {}]
  %s5 = inlined_call_operand.vmem [shape: f32[256,8], index: 5, kind: output, shape index: {}]
  %s6 = sld [smem:[#allocation0]]
  $region53: #{tpu_custom_call.1} parent=0
    _
  %s8 = ssub.s32 1, %s6
  %s9 = scalar_select 0, %s8, %s6
  loop: start=0, step=1, limit=10
  $region2: #{tpu_custom_call.1} parent=0 // loop_pre_header
    _
  $region3: #{tpu_custom_call.1} parent=0 // loop_header
    %s11 = sphi 0, %s15
    %p12 = scmp.ge.s32.totalorder %s11, 10
    %s21 = sphi 0, %s23
    %s24 = sphi 0, %s21
    %s25 = sphi 0, %s24
    %s41 = sphi 0, %s25
    %s45 = sphi 0, %s45
    %s47 = sphi 0, %s45
    %s48 = sphi 0, %s47
    %s62 = sphi 0, %s48
    %s66 = sphi 0, %s66
    %s68 = sphi 0, %s66
    %s69 = sphi 0, %s68
    %s83 = sphi 0, %s69
    %s87 = sphi 0, %s87
    %s89 = sphi 0, %s87
    %s90 = sphi 0, %s89
    %s104 = sphi 0, %s90
    %s108 = sphi 0, %s108
    %s110 = sphi 0, %s108
    %s111 = sphi 0, %s110
    %s125 = sphi 0, %s111
    %s131 = sphi 0, %s133
    %s134 = sphi 0, %s131
    %s135 = sphi 0, %s134
    %s151 = sphi 0, %s135
  $region4: #{tpu_custom_call.1} parent=0 // loop_header_branch
    %14 = sbr.rel (%p12) target = $region8
  $region5: #{tpu_custom_call.1} parent=0 // loop_body
    %s16 = ssub.s32 %s11, 1
    %s17 = ssub.s32 %s11, 2
    %s18 = sadd.s32 %s11, 1
    %s19 = ssub.s32 %s11, %s18
    %p20 = scmp.eq.s32.totalorder %s19, 0
    %s22 = sadd.s32 %s21, 1
    %s23 = scalar_select %p20, %s21, %s22
    %p26 = pneg %p20
    %p27 = scmp.eq.s32.totalorder %s11, 7
    %p28 = por %p26, %p27
    %p29 = scmp.ne.s32.totalorder %s21, %s24
    %p30 = scmp.eq.s32.totalorder %s11, 0
    %p31 = por %p29, %p30
    %p32 = scmp.ne.s32.totalorder %s21, %s24
    %p33 = scmp.eq.s32.totalorder %s16, 7
    %p34 = por %p32, %p33
    %p35 = scmp.ne.s32.totalorder %s24, %s25
    %p36 = scmp.eq.s32.totalorder %s16, 0
    %p37 = por %p35, %p36
    %p38 = scmp.ne.s32.totalorder %s24, %s25
    %p39 = scmp.eq.s32.totalorder %s17, 7
    %p40 = por %p38, %p39
    %p42 = scmp.ne.s32.totalorder %s25, %s41
    %p43 = scmp.eq.s32.totalorder %s17, 0
    %p44 = por %p42, %p43
    %s46 = sadd.s32 %s45, 1
    %p49 = scmp.eq.s32.totalorder %s11, 7
    %p50 = scmp.ne.s32.totalorder %s45, %s47
    %p51 = scmp.eq.s32.totalorder %s11, 0
    %p52 = por %p50, %p51
    %p53 = scmp.ne.s32.totalorder %s45, %s47
    %p54 = scmp.eq.s32.totalorder %s16, 7
    %p55 = por %p53, %p54
    %p56 = scmp.ne.s32.totalorder %s47, %s48
    %p57 = scmp.eq.s32.totalorder %s16, 0
    %p58 = por %p56, %p57
    %p59 = scmp.ne.s32.totalorder %s47, %s48
    %p60 = scmp.eq.s32.totalorder %s17, 7
    %p61 = por %p59, %p60
    %p63 = scmp.ne.s32.totalorder %s48, %s62
    %p64 = scmp.eq.s32.totalorder %s17, 0
    %p65 = por %p63, %p64
    %s67 = sadd.s32 %s66, 1
    %p70 = scmp.eq.s32.totalorder %s11, 7
    %p71 = scmp.ne.s32.totalorder %s66, %s68
    %p72 = scmp.eq.s32.totalorder %s11, 0
    %p73 = por %p71, %p72
    %p74 = scmp.ne.s32.totalorder %s66, %s68
    %p75 = scmp.eq.s32.totalorder %s16, 7
    %p76 = por %p74, %p75
    %p77 = scmp.ne.s32.totalorder %s68, %s69
    %p78 = scmp.eq.s32.totalorder %s16, 0
    %p79 = por %p77, %p78
    %p80 = scmp.ne.s32.totalorder %s68, %s69
    %p81 = scmp.eq.s32.totalorder %s17, 7
    %p82 = por %p80, %p81
    %p84 = scmp.ne.s32.totalorder %s69, %s83
    %p85 = scmp.eq.s32.totalorder %s17, 0
    %p86 = por %p84, %p85
    %s88 = sadd.s32 %s87, 1
    %p91 = scmp.eq.s32.totalorder %s11, 7
    %p92 = scmp.ne.s32.totalorder %s87, %s89
    %p93 = scmp.eq.s32.totalorder %s11, 0
    %p94 = por %p92, %p93
    %p95 = scmp.ne.s32.totalorder %s87, %s89
    %p96 = scmp.eq.s32.totalorder %s16, 7
    %p97 = por %p95, %p96
    %p98 = scmp.ne.s32.totalorder %s89, %s90
    %p99 = scmp.eq.s32.totalorder %s16, 0
    %p100 = por %p98, %p99
    %p101 = scmp.ne.s32.totalorder %s89, %s90
    %p102 = scmp.eq.s32.totalorder %s17, 7
    %p103 = por %p101, %p102
    %p105 = scmp.ne.s32.totalorder %s90, %s104
    %p106 = scmp.eq.s32.totalorder %s17, 0
    %p107 = por %p105, %p106
    %s109 = sadd.s32 %s108, 1
    %p112 = scmp.eq.s32.totalorder %s11, 7
    %p113 = scmp.ne.s32.totalorder %s108, %s110
    %p114 = scmp.eq.s32.totalorder %s11, 0
    %p115 = por %p113, %p114
    %p116 = scmp.ne.s32.totalorder %s108, %s110
    %p117 = scmp.eq.s32.totalorder %s16, 7
    %p118 = por %p116, %p117
    %p119 = scmp.ne.s32.totalorder %s110, %s111
    %p120 = scmp.eq.s32.totalorder %s16, 0
    %p121 = por %p119, %p120
    %p122 = scmp.ne.s32.totalorder %s110, %s111
    %p123 = scmp.eq.s32.totalorder %s17, 7
    %p124 = por %p122, %p123
    %p126 = scmp.ne.s32.totalorder %s111, %s125
    %p127 = scmp.eq.s32.totalorder %s17, 0
    %p128 = por %p126, %p127
    %s129 = ssub.s32 %s11, %s18
    %p130 = scmp.eq.s32.totalorder %s129, 0
    %s132 = sadd.s32 %s131, 1
    %s133 = scalar_select %p130, %s131, %s132
    %p136 = pneg %p130
    %p137 = scmp.eq.s32.totalorder %s11, 7
    %p138 = por %p136, %p137
    %p139 = scmp.ne.s32.totalorder %s131, %s134
    %p140 = scmp.eq.s32.totalorder %s11, 0
    %p141 = por %p139, %p140
    %p142 = scmp.ne.s32.totalorder %s131, %s134
    %p143 = scmp.eq.s32.totalorder %s16, 7
    %p144 = por %p142, %p143
    %p145 = scmp.ne.s32.totalorder %s134, %s135
    %p146 = scmp.eq.s32.totalorder %s16, 0
    %p147 = por %p145, %p146
    %p148 = scmp.ne.s32.totalorder %s134, %s135
    %p149 = scmp.eq.s32.totalorder %s17, 7
    %p150 = por %p148, %p149
    %p152 = scmp.ne.s32.totalorder %s135, %s151
    %p153 = scmp.eq.s32.totalorder %s17, 0
    %p154 = por %p152, %p153
    %p155 = scmp.le.s32.totalorder 1, %s11
    %p156 = scmp.lt.s32.totalorder %s11, 9
    %p157 = pnand %p155, %p156
    %p158 = pneg %p157
    // Predicated region
    $region9: #{tpu_custom_call.1} parent=5 // pred_check
      _
    $region10: #{tpu_custom_call.1} parent=5 // pred_check_branch
      %160 = sbr.rel (%p157) target = $region12
    $region11: #{tpu_custom_call.1} parent=5 // pred_region
      %s161 = ssub.s32 %s11, 1
      // Predicated region
      $region13: #{tpu_custom_call.1} parent=11 // pred_check
        %p162 = pneg %p58
      $region14: #{tpu_custom_call.1} parent=11 // pred_check_branch
        %164 = sbr.rel (%p162) target = $region16
      $region15: #{tpu_custom_call.1} parent=11 // pred_region
        _
      $region16: #{tpu_custom_call.1} parent=11 // pred_fallthru
        _
      // Predicated region
      $region17: #{tpu_custom_call.1} parent=11 // pred_check
        %p165 = pneg %p79
      $region18: #{tpu_custom_call.1} parent=11 // pred_check_branch
        %167 = sbr.rel (%p165) target = $region20
      $region19: #{tpu_custom_call.1} parent=11 // pred_region
        _
      $region20: #{tpu_custom_call.1} parent=11 // pred_fallthru
        _
      // Predicated region
      $region21: #{tpu_custom_call.1} parent=11 // pred_check
        %p168 = pneg %p100
      $region22: #{tpu_custom_call.1} parent=11 // pred_check_branch
        %170 = sbr.rel (%p168) target = $region24
      $region23: #{tpu_custom_call.1} parent=11 // pred_region
        _
      $region24: #{tpu_custom_call.1} parent=11 // pred_fallthru
        _
      // Predicated region
      $region25: #{tpu_custom_call.1} parent=11 // pred_check
        %p171 = pneg %p121
      $region26: #{tpu_custom_call.1} parent=11 // pred_check_branch
        %173 = sbr.rel (%p171) target = $region28
      $region27: #{tpu_custom_call.1} parent=11 // pred_region
        _
      $region28: #{tpu_custom_call.1} parent=11 // pred_fallthru
        _
    $region12: #{tpu_custom_call.1} parent=5 // pred_fallthru
      _
    %p174 = scmp.lt.s32.totalorder %s11, 8
    // Predicated region
    $region29: #{tpu_custom_call.1} parent=5 // pred_check
      %p175 = pneg %p174
    $region30: #{tpu_custom_call.1} parent=5 // pred_check_branch
      %177 = sbr.rel (%p175) target = $region32
    $region31: #{tpu_custom_call.1} parent=5 // pred_region
      // Predicated region
      $region33: #{tpu_custom_call.1} parent=31 // pred_check
        %p178 = pneg %p31
      $region34: #{tpu_custom_call.1} parent=31 // pred_check_branch
        %180 = sbr.rel (%p178) target = $region36
      $region35: #{tpu_custom_call.1} parent=31 // pred_region
        %s181 = smul.u32 4, %s11
        %p182 = scmp.lt.s32.totalorder %s181, 31
        %s183 = scalar_select %p182, %s181, 31
        %s184 = smul.addr %s183, 8
        %s185 = scalar_lea.vmem %s0, %s184
        %s186 = smul.u32 4, %s11
      $region36: #{tpu_custom_call.1} parent=31 // pred_fallthru
        _
    $region32: #{tpu_custom_call.1} parent=5 // pred_fallthru
      _
    %p187 = scmp.le.s32.totalorder 1, %s11
    %p188 = scmp.lt.s32.totalorder %s11, 9
    %p189 = pnand %p187, %p188
    %p190 = pneg %p189
    // Predicated region
    $region37: #{tpu_custom_call.1} parent=5 // pred_check
      _
    $region38: #{tpu_custom_call.1} parent=5 // pred_check_branch
      %192 = sbr.rel (%p189) target = $region40
    $region39: #{tpu_custom_call.1} parent=5 // pred_region
      %s193 = ssub.s32 %s11, 1
      %s194 = smul.u32 4, %s16
      %p195 = scmp.lt.s32.totalorder %s194, 31
      %s196 = scalar_select %p195, %s194, 31
      %s197 = smul.addr %s196, 8
      %s198 = scalar_lea.vmem %s0, %s197
      %p199 = pneg %p37
      %p200 = pneg %p34
      %p201 = pneg %p58
      %p202 = pneg %p55
      %p203 = pneg %p79
      %p204 = pneg %p76
      %p205 = pneg %p100
      %p206 = pneg %p97
      %p207 = pneg %p121
      %p208 = pneg %p118
      %p209 = pneg %p147
      %p210 = pneg %p144
      %s211 = smul.u32 4, %s16
      %p212 = scmp.lt.s32.totalorder %s211, 31
      %s213 = scalar_select %p212, %s211, 31
      %s214 = smul.addr %s213, 8
      %s215 = scalar_lea.vmem %s5, %s214
      %s216 = smul.u32 4, %s16
      %p217 = scmp.lt.s32.totalorder %s216, 31
      %s218 = scalar_select %p217, %s216, 31
      %s219 = smul.addr %s218, 8
      %s220 = scalar_lea.vmem %s0, %s219
      %s221 = smul.u32 4, %s16
      %s222 = smul.u32 4, %s16
      %p223 = scmp.lt.s32.totalorder %s222, 31
      %s224 = scalar_select %p223, %s222, 31
      %s225 = smul.addr %s224, 8
      %s226 = scalar_lea.vmem %s5, %s225
      %s227 = smul.u32 4, %s16
      %v229 = vld [vmem:[%s220] sm:$0xff]
      %v230 = vld [vmem:[%s220 + $0x8] sm:$0xff]
      %v231 = vld [vmem:[%s220 + $0x10] sm:$0xff]
      %v232 = vld [vmem:[%s220 + $0x18] sm:$0xff]
      %v233 = vpack.c.bf16 %v230, %v229
      %v234 = vpack.c.bf16 %v232, %v231
      %v235 = vld [vmem:[%s1] sm:$0xf]
      %v236 = vld [vmem:[%s1 + $0x4] sm:$0xf]
      %v237 = vld [vmem:[%s1 + $0x8] sm:$0xf]
      %v238 = vld [vmem:[%s1 + $0xc] sm:$0xf]
      %v239 = vld [vmem:[%s2] sm:$0x1]
      %v241 = vlaneseq
      %v242 = vshrl.u32 %v241, 7
      %v243 = vsub.s32 0, %v242
      %v244 = vrot.slane %v239, %v243
      %v250 = vunpack.c.l.b16 %v235
      %v251 = vunpack.c.l.b16 %v236
      %v252 = vunpack.c.l.b16 %v237
      %v253 = vunpack.c.l.b16 %v238
      %v254 = vpack.c.b16 %v251, %v250
      %v255 = vpack.c.b16 %v253, %v252
      %vm258 = vcmask 261120
      %v260 = vsel %vm258, %v233, 0
      %v263 = vsel %vm258, %v234, 0
      %265 = vmatprep.subr.bf16.mxu0 0
      %266 = vmatpush1.bf16.msra.mxu0 0
      %267 = vmatprep.subr.bf16.mxu0 0
      %268 = vmatpush1.bf16.msra.mxu0 0
      %269 = vmatprep.subr.bf16.mxu0 0
      %270 = vmatpush1.bf16.msra.mxu0 0
      %271 = vmatprep.subr.bf16.mxu0 0
      %272 = vmatpush1.bf16.msra.mxu0 0
      %273 = vmatprep.subr.bf16.mxu0 0
      %274 = vmatpush1.bf16.msra.mxu0 0
      %275 = vmatprep.subr.bf16.mxu0 0
      %276 = vmatpush1.bf16.msra.mxu0 0
      %277 = vmatprep.subr.bf16.mxu0 0
      %278 = vmatpush1.bf16.msra.mxu0 %v255
      %279 = vmatprep.subr.bf16.mxu0 0
      %280 = vmatpush1.bf16.msra.mxu0 %v254
      %281 = vmatprep.subr.bf16.mxu0 0
      %282 = vmatpush2.bf16.msra.mxu0 0
      %283 = vmatprep.subr.bf16.mxu0 0
      %284 = vmatpush2.bf16.msra.mxu0 0
      %285 = vmatprep.subr.bf16.mxu0 0
      %286 = vmatpush2.bf16.msra.mxu0 0
      %287 = vmatprep.subr.bf16.mxu0 0
      %288 = vmatpush2.bf16.msra.mxu0 0
      %289 = vmatprep.subr.bf16.mxu0 0
      %290 = vmatpush2.bf16.msra.mxu0 0
      %291 = vmatprep.subr.bf16.mxu0 0
      %292 = vmatpush2.bf16.msra.mxu0 0
      %293 = vmatprep.subr.bf16.mxu0 0
      %294 = vmatpush2.bf16.msra.mxu0 0
      %295 = vmatprep.subr.bf16.mxu0 0
      %296 = vmatpush2.bf16.msra.mxu0 0
      %297 = vmatprep.mubr.bf16.mxu0 0
      %298 = vmatmul.mubr.bf16.gmra.mxu0 %v260
      %v299 = vpop.f32.mrf.mxu0
      %v300 = vadd.f32 %v244, %v299
      %v301 = vpop.f32.mrf.mxu0
      %v302 = vpop.f32.mrf.mxu0
      %v303 = vadd.f32 %v244, %v302
      %v304 = vpop.f32.mrf.mxu0
      %305 = vmatprep.mubr.bf16.mxu0 0
      %306 = vmatmul.mubr.bf16.gmra.mxu0 %v263
      %v307 = vpop.f32.mrf.mxu0
      %v308 = vadd.f32 %v244, %v307
      %v309 = vpop.f32.mrf.mxu0
      %v310 = vpop.f32.mrf.mxu0
      %v311 = vadd.f32 %v244, %v310
      %v312 = vpop.f32.mrf.mxu0
      %313 = vdwg.mxu0
      %v314 = vmax.f32 %v300, 0.0
      %v315 = vmax.f32 %v303, 0.0
      %v316 = vmax.f32 %v308, 0.0
      %v317 = vmax.f32 %v311, 0.0
      %v318 = vpack.c.bf16 %v315, %v314
      %v319 = vpack.c.bf16 %v317, %v316
      %v320 = vld [vmem:[%s3] sm:$0xf]
      %v321 = vld [vmem:[%s3 + $0x4] sm:$0xf]
      %v322 = vld [vmem:[%s4] sm:$0x1]
      %v324 = vlaneseq
      %v325 = vshrl.u32 %v324, 7
      %v326 = vsub.s32 0, %v325
      %v327 = vrot.slane %v322, %v326
      %v331 = vunpack.c.l.b16 %v320
      %v332 = vunpack.c.l.b16 %v321
      %v333 = vpack.c.b16 %v332, %v331
      %vm335 = vcmask 130048
      %v337 = vsel %vm335, %v318, 0
      %v340 = vsel %vm335, %v319, 0
      %342 = vmatprep.subr.bf16.mxu0 0
      %343 = vmatpush1.bf16.msra.mxu0 0
      %344 = vmatprep.subr.bf16.mxu0 0
      %345 = vmatpush1.bf16.msra.mxu0 0
      %346 = vmatprep.subr.bf16.mxu0 0
      %347 = vmatpush1.bf16.msra.mxu0 0
      %348 = vmatprep.subr.bf16.mxu0 0
      %349 = vmatpush1.bf16.msra.mxu0 0
      %350 = vmatprep.subr.bf16.mxu0 0
      %351 = vmatpush1.bf16.msra.mxu0 0
      %352 = vmatprep.subr.bf16.mxu0 0
      %353 = vmatpush1.bf16.msra.mxu0 0
      %354 = vmatprep.subr.bf16.mxu0 0
      %355 = vmatpush1.bf16.msra.mxu0 0
      %356 = vmatprep.subr.bf16.mxu0 0
      %357 = vmatpush1.bf16.msra.mxu0 %v333
      %358 = vmatprep.subr.bf16.mxu0 0
      %359 = vmatpush2.bf16.msra.mxu0 0
      %360 = vmatprep.subr.bf16.mxu0 0
      %361 = vmatpush2.bf16.msra.mxu0 0
      %362 = vmatprep.subr.bf16.mxu0 0
      %363 = vmatpush2.bf16.msra.mxu0 0
      %364 = vmatprep.subr.bf16.mxu0 0
      %365 = vmatpush2.bf16.msra.mxu0 0
      %366 = vmatprep.subr.bf16.mxu0 0
      %367 = vmatpush2.bf16.msra.mxu0 0
      %368 = vmatprep.subr.bf16.mxu0 0
      %369 = vmatpush2.bf16.msra.mxu0 0
      %370 = vmatprep.subr.bf16.mxu0 0
      %371 = vmatpush2.bf16.msra.mxu0 0
      %372 = vmatprep.subr.bf16.mxu0 0
      %373 = vmatpush2.bf16.msra.mxu0 0
      %374 = vmatprep.mubr.bf16.mxu0 0
      %375 = vmatmul.mubr.bf16.gmra.mxu0 %v337
      %v376 = vpop.f32.mrf.mxu0
      %v377 = vadd.f32 %v327, %v376
      %v378 = vpop.f32.mrf.mxu0
      %v379 = vpop.f32.mrf.mxu0
      %v380 = vadd.f32 %v327, %v379
      %v381 = vpop.f32.mrf.mxu0
      %382 = vmatprep.mubr.bf16.mxu0 0
      %383 = vmatmul.mubr.bf16.gmra.mxu0 %v340
      %v384 = vpop.f32.mrf.mxu0
      %v385 = vadd.f32 %v327, %v384
      %v386 = vpop.f32.mrf.mxu0
      %v387 = vpop.f32.mrf.mxu0
      %v388 = vadd.f32 %v327, %v387
      %v389 = vpop.f32.mrf.mxu0
      %390 = vdwg.mxu0
      %vm391 = vcmask 64512
      %392 = vst.msk [vmem:[%s226] sm:$0xff] %vm391, %v377
      %393 = vst.msk [vmem:[%s226 + $0x8] sm:$0xff] %vm391, %v380
      %394 = vst.msk [vmem:[%s226 + $0x10] sm:$0xff] %vm391, %v385
      %395 = vst.msk [vmem:[%s226 + $0x18] sm:$0xff] %vm391, %v388
      %s396 = smul.u32 4, %s16
      %p397 = scmp.lt.s32.totalorder %s396, 31
      %s398 = scalar_select %p397, %s396, 31
      %s399 = smul.addr %s398, 8
      %s400 = scalar_lea.vmem %s5, %s399
      // Predicated region
      $region41: #{tpu_custom_call.1} parent=39 // pred_check
        %p401 = pneg %p144
      $region42: #{tpu_custom_call.1} parent=39 // pred_check_branch
        %403 = sbr.rel (%p401) target = $region44
      $region43: #{tpu_custom_call.1} parent=39 // pred_region
        %s404 = smul.u32 4, %s16
      $region44: #{tpu_custom_call.1} parent=39 // pred_fallthru
        _
    $region40: #{tpu_custom_call.1} parent=5 // pred_fallthru
      _
    %p405 = scmp.le.s32.totalorder 2, %s11
    // Predicated region
    $region45: #{tpu_custom_call.1} parent=5 // pred_check
      %p406 = pneg %p405
    $region46: #{tpu_custom_call.1} parent=5 // pred_check_branch
      %408 = sbr.rel (%p406) target = $region48
    $region47: #{tpu_custom_call.1} parent=5 // pred_region
      %s409 = ssub.s32 %s11, 2
      // Predicated region
      $region49: #{tpu_custom_call.1} parent=47 // pred_check
        %p410 = pneg %p150
      $region50: #{tpu_custom_call.1} parent=47 // pred_check_branch
        %412 = sbr.rel (%p410) target = $region52
      $region51: #{tpu_custom_call.1} parent=47 // pred_region
        %s413 = smul.u32 4, %s17
        %p414 = scmp.lt.s32.totalorder %s413, 31
        %s415 = scalar_select %p414, %s413, 31
        %s416 = smul.addr %s415, 8
        %s417 = scalar_lea.vmem %s5, %s416
      $region52: #{tpu_custom_call.1} parent=47 // pred_fallthru
        _
    $region48: #{tpu_custom_call.1} parent=5 // pred_fallthru
      _
  $region6: #{tpu_custom_call.1} parent=0 // loop_footer
    %s15 = sadd.s32 1, %s11
  $region7: #{tpu_custom_call.1} parent=0 // loop_footer_branch
    %10 = sbr.rel target = $region3
  $region8: #{tpu_custom_call.1} parent=0 // loop_exit
    _

// kernel: tpu_custom_call.1
$region0: #{tpu_custom_call.1}
  #allocation0 [shape = 'u32[]', space=smem, size = 0x4, offset = 0x4, fixed_abs, tag = 'smem constant byte address 0x4 - core index']
  #allocation1 [shape = 'u32[144,128]{1,0:T(1,128)}', space=vmem, size = 0x12000, scoped, tag = 'internal scratch']
  %s0 = inlined_call_operand.vmem [shape: f32[256,32], index: 0, kind: input, shape index: {}]
  %s1 = inlined_call_operand.vmem [shape: bf16[32,16], index: 1, kind: input, shape index: {}]
  %s2 = inlined_call_operand.vmem [shape: f32[1,16], index: 2, kind: input, shape index: {}]
  %s3 = inlined_call_operand.vmem [shape: bf16[16,8], index: 3, kind: input, shape index: {}]
  %s4 = inlined_call_operand.vmem [shape: f32[1,8], index: 4, kind: input, shape index: {}]
  %s5 = inlined_call_operand.vmem [shape: f32[256,8], index: 5, kind: output, shape index: {}]
  %s6 = sld [smem:[#allocation0]]
  $region53: #{tpu_custom_call.1} parent=0
    _
  %s8 = ssub.s32 1, %s6
  %s9 = scalar_select 0, %s8, %s6
  loop: start=0, step=1, limit=10
  $region2: #{tpu_custom_call.1} parent=0 // loop_pre_header
    _
  $region3: #{tpu_custom_call.1} parent=0 // loop_header
    %s11 = sphi 0, %s15
    %p12 = scmp.ge.s32.totalorder %s11, 10
    %s21 = sphi 0, %s23
    %s24 = sphi 0, %s21
    %s25 = sphi 0, %s24
    %s41 = sphi 0, %s25
    %s45 = sphi 0, %s45
    %s47 = sphi 0, %s45
    %s48 = sphi 0, %s47
    %s62 = sphi 0, %s48
    %s66 = sphi 0, %s66
    %s68 = sphi 0, %s66
    %s69 = sphi 0, %s68
    %s83 = sphi 0, %s69
    %s87 = sphi 0, %s87
    %s89 = sphi 0, %s87
    %s90 = sphi 0, %s89
    %s104 = sphi 0, %s90
    %s108 = sphi 0, %s108
    %s110 = sphi 0, %s108
    %s111 = sphi 0, %s110
    %s125 = sphi 0, %s111
    %s131 = sphi 0, %s133
    %s134 = sphi 0, %s131
    %s135 = sphi 0, %s134
    %s151 = sphi 0, %s135
  $region4: #{tpu_custom_call.1} parent=0 // loop_header_branch
    %14 = sbr.rel (%p12) target = $region8
  $region5: #{tpu_custom_call.1} parent=0 // loop_body
    %s16 = ssub.s32 %s11, 1
    %s17 = ssub.s32 %s11, 2
    %s18 = sadd.s32 %s11, 1
    %s19 = ssub.s32 %s11, %s18
    %p20 = scmp.eq.s32.totalorder %s19, 0
    %s22 = sadd.s32 %s21, 1
    %s23 = scalar_select %p20, %s21, %s22
    %p26 = pneg %p20
    %p27 = scmp.eq.s32.totalorder %s11, 7
    %p28 = por %p26, %p27
    %p29 = scmp.ne.s32.totalorder %s21, %s24
    %p30 = scmp.eq.s32.totalorder %s11, 0
    %p31 = por %p29, %p30
    %p32 = scmp.ne.s32.totalorder %s21, %s24
    %p33 = scmp.eq.s32.totalorder %s16, 7
    %p34 = por %p32, %p33
    %p35 = scmp.ne.s32.totalorder %s24, %s25
    %p36 = scmp.eq.s32.totalorder %s16, 0
    %p37 = por %p35, %p36
    %p38 = scmp.ne.s32.totalorder %s24, %s25
    %p39 = scmp.eq.s32.totalorder %s17, 7
    %p40 = por %p38, %p39
    %p42 = scmp.ne.s32.totalorder %s25, %s41
    %p43 = scmp.eq.s32.totalorder %s17, 0
    %p44 = por %p42, %p43
    %s46 = sadd.s32 %s45, 1
    %p49 = scmp.eq.s32.totalorder %s11, 7
    %p50 = scmp.ne.s32.totalorder %s45, %s47
    %p51 = scmp.eq.s32.totalorder %s11, 0
    %p52 = por %p50, %p51
    %p53 = scmp.ne.s32.totalorder %s45, %s47
    %p54 = scmp.eq.s32.totalorder %s16, 7
    %p55 = por %p53, %p54
    %p56 = scmp.ne.s32.totalorder %s47, %s48
    %p57 = scmp.eq.s32.totalorder %s16, 0
    %p58 = por %p56, %p57
    %p59 = scmp.ne.s32.totalorder %s47, %s48
    %p60 = scmp.eq.s32.totalorder %s17, 7
    %p61 = por %p59, %p60
    %p63 = scmp.ne.s32.totalorder %s48, %s62
    %p64 = scmp.eq.s32.totalorder %s17, 0
    %p65 = por %p63, %p64
    %s67 = sadd.s32 %s66, 1
    %p70 = scmp.eq.s32.totalorder %s11, 7
    %p71 = scmp.ne.s32.totalorder %s66, %s68
    %p72 = scmp.eq.s32.totalorder %s11, 0
    %p73 = por %p71, %p72
    %p74 = scmp.ne.s32.totalorder %s66, %s68
    %p75 = scmp.eq.s32.totalorder %s16, 7
    %p76 = por %p74, %p75
    %p77 = scmp.ne.s32.totalorder %s68, %s69
    %p78 = scmp.eq.s32.totalorder %s16, 0
    %p79 = por %p77, %p78
    %p80 = scmp.ne.s32.totalorder %s68, %s69
    %p81 = scmp.eq.s32.totalorder %s17, 7
    %p82 = por %p80, %p81
    %p84 = scmp.ne.s32.totalorder %s69, %s83
    %p85 = scmp.eq.s32.totalorder %s17, 0
    %p86 = por %p84, %p85
    %s88 = sadd.s32 %s87, 1
    %p91 = scmp.eq.s32.totalorder %s11, 7
    %p92 = scmp.ne.s32.totalorder %s87, %s89
    %p93 = scmp.eq.s32.totalorder %s11, 0
    %p94 = por %p92, %p93
    %p95 = scmp.ne.s32.totalorder %s87, %s89
    %p96 = scmp.eq.s32.totalorder %s16, 7
    %p97 = por %p95, %p96
    %p98 = scmp.ne.s32.totalorder %s89, %s90
    %p99 = scmp.eq.s32.totalorder %s16, 0
    %p100 = por %p98, %p99
    %p101 = scmp.ne.s32.totalorder %s89, %s90
    %p102 = scmp.eq.s32.totalorder %s17, 7
    %p103 = por %p101, %p102
    %p105 = scmp.ne.s32.totalorder %s90, %s104
    %p106 = scmp.eq.s32.totalorder %s17, 0
    %p107 = por %p105, %p106
    %s109 = sadd.s32 %s108, 1
    %p112 = scmp.eq.s32.totalorder %s11, 7
    %p113 = scmp.ne.s32.totalorder %s108, %s110
    %p114 = scmp.eq.s32.totalorder %s11, 0
    %p115 = por %p113, %p114
    %p116 = scmp.ne.s32.totalorder %s108, %s110
    %p117 = scmp.eq.s32.totalorder %s16, 7
    %p118 = por %p116, %p117
    %p119 = scmp.ne.s32.totalorder %s110, %s111
    %p120 = scmp.eq.s32.totalorder %s16, 0
    %p121 = por %p119, %p120
    %p122 = scmp.ne.s32.totalorder %s110, %s111
    %p123 = scmp.eq.s32.totalorder %s17, 7
    %p124 = por %p122, %p123
    %p126 = scmp.ne.s32.totalorder %s111, %s125
    %p127 = scmp.eq.s32.totalorder %s17, 0
    %p128 = por %p126, %p127
    %s129 = ssub.s32 %s11, %s18
    %p130 = scmp.eq.s32.totalorder %s129, 0
    %s132 = sadd.s32 %s131, 1
    %s133 = scalar_select %p130, %s131, %s132
    %p136 = pneg %p130
    %p137 = scmp.eq.s32.totalorder %s11, 7
    %p138 = por %p136, %p137
    %p139 = scmp.ne.s32.totalorder %s131, %s134
    %p140 = scmp.eq.s32.totalorder %s11, 0
    %p141 = por %p139, %p140
    %p142 = scmp.ne.s32.totalorder %s131, %s134
    %p143 = scmp.eq.s32.totalorder %s16, 7
    %p144 = por %p142, %p143
    %p145 = scmp.ne.s32.totalorder %s134, %s135
    %p146 = scmp.eq.s32.totalorder %s16, 0
    %p147 = por %p145, %p146
    %p148 = scmp.ne.s32.totalorder %s134, %s135
    %p149 = scmp.eq.s32.totalorder %s17, 7
    %p150 = por %p148, %p149
    %p152 = scmp.ne.s32.totalorder %s135, %s151
    %p153 = scmp.eq.s32.totalorder %s17, 0
    %p154 = por %p152, %p153
    %p155 = scmp.le.s32.totalorder 1, %s11
    %p156 = scmp.lt.s32.totalorder %s11, 9
    %p157 = pnand %p155, %p156
    %p158 = pneg %p157
    // Predicated region
    $region9: #{tpu_custom_call.1} parent=5 // pred_check
      _
    $region10: #{tpu_custom_call.1} parent=5 // pred_check_branch
      %160 = sbr.rel (%p157) target = $region12
    $region11: #{tpu_custom_call.1} parent=5 // pred_region
      %s161 = ssub.s32 %s11, 1
      // Predicated region
      $region13: #{tpu_custom_call.1} parent=11 // pred_check
        %p162 = pneg %p58
      $region14: #{tpu_custom_call.1} parent=11 // pred_check_branch
        %164 = sbr.rel (%p162) target = $region16
      $region15: #{tpu_custom_call.1} parent=11 // pred_region
        _
      $region16: #{tpu_custom_call.1} parent=11 // pred_fallthru
        _
      // Predicated region
      $region17: #{tpu_custom_call.1} parent=11 // pred_check
        %p165 = pneg %p79
      $region18: #{tpu_custom_call.1} parent=11 // pred_check_branch
        %167 = sbr.rel (%p165) target = $region20
      $region19: #{tpu_custom_call.1} parent=11 // pred_region
        _
      $region20: #{tpu_custom_call.1} parent=11 // pred_fallthru
        _
      // Predicated region
      $region21: #{tpu_custom_call.1} parent=11 // pred_check
        %p168 = pneg %p100
      $region22: #{tpu_custom_call.1} parent=11 // pred_check_branch
        %170 = sbr.rel (%p168) target = $region24
      $region23: #{tpu_custom_call.1} parent=11 // pred_region
        _
      $region24: #{tpu_custom_call.1} parent=11 // pred_fallthru
        _
      // Predicated region
      $region25: #{tpu_custom_call.1} parent=11 // pred_check
        %p171 = pneg %p121
      $region26: #{tpu_custom_call.1} parent=11 // pred_check_branch
        %173 = sbr.rel (%p171) target = $region28
      $region27: #{tpu_custom_call.1} parent=11 // pred_region
        _
      $region28: #{tpu_custom_call.1} parent=11 // pred_fallthru
        _
    $region12: #{tpu_custom_call.1} parent=5 // pred_fallthru
      _
    %p174 = scmp.lt.s32.totalorder %s11, 8
    // Predicated region
    $region29: #{tpu_custom_call.1} parent=5 // pred_check
      %p175 = pneg %p174
    $region30: #{tpu_custom_call.1} parent=5 // pred_check_branch
      %177 = sbr.rel (%p175) target = $region32
    $region31: #{tpu_custom_call.1} parent=5 // pred_region
      // Predicated region
      $region33: #{tpu_custom_call.1} parent=31 // pred_check
        %p178 = pneg %p31
      $region34: #{tpu_custom_call.1} parent=31 // pred_check_branch
        %180 = sbr.rel (%p178) target = $region36
      $region35: #{tpu_custom_call.1} parent=31 // pred_region
        %s181 = smul.u32 4, %s11
        %p182 = scmp.lt.s32.totalorder %s181, 31
        %s183 = scalar_select %p182, %s181, 31
        %s184 = smul.addr %s183, 8
        %s185 = scalar_lea.vmem %s0, %s184
        %s186 = smul.u32 4, %s11
      $region36: #{tpu_custom_call.1} parent=31 // pred_fallthru
        _
    $region32: #{tpu_custom_call.1} parent=5 // pred_fallthru
      _
    %p187 = scmp.le.s32.totalorder 1, %s11
    %p188 = scmp.lt.s32.totalorder %s11, 9
    %p189 = pnand %p187, %p188
    %p190 = pneg %p189
    // Predicated region
    $region37: #{tpu_custom_call.1} parent=5 // pred_check
      _
    $region38: #{tpu_custom_call.1} parent=5 // pred_check_branch
      %192 = sbr.rel (%p189) target = $region40
    $region39: #{tpu_custom_call.1} parent=5 // pred_region
      %s193 = ssub.s32 %s11, 1
      %s194 = smul.u32 4, %s16
      %p195 = scmp.lt.s32.totalorder %s194, 31
      %s196 = scalar_select %p195, %s194, 31
      %s197 = smul.addr %s196, 8
      %s198 = scalar_lea.vmem %s0, %s197
      %p199 = pneg %p37
      %p200 = pneg %p34
      %p201 = pneg %p58
      %p202 = pneg %p55
      %p203 = pneg %p79
      %p204 = pneg %p76
      %p205 = pneg %p100
      %p206 = pneg %p97
      %p207 = pneg %p121
      %p208 = pneg %p118
      %p209 = pneg %p147
      %p210 = pneg %p144
      %s211 = smul.u32 4, %s16
      %p212 = scmp.lt.s32.totalorder %s211, 31
      %s213 = scalar_select %p212, %s211, 31
      %s214 = smul.addr %s213, 8
      %s215 = scalar_lea.vmem %s5, %s214
      %s216 = smul.u32 4, %s16
      %p217 = scmp.lt.s32.totalorder %s216, 31
      %s218 = scalar_select %p217, %s216, 31
      %s219 = smul.addr %s218, 8
      %s220 = scalar_lea.vmem %s0, %s219
      %s221 = smul.u32 4, %s16
      %s222 = smul.u32 4, %s16
      %p223 = scmp.lt.s32.totalorder %s222, 31
      %s224 = scalar_select %p223, %s222, 31
      %s225 = smul.addr %s224, 8
      %s226 = scalar_lea.vmem %s5, %s225
      %s227 = smul.u32 4, %s16
      %v229 = vld [vmem:[%s220] sm:$0xff]
      %v230 = vld [vmem:[%s220 + $0x8] sm:$0xff]
      %v231 = vld [vmem:[%s220 + $0x10] sm:$0xff]
      %v232 = vld [vmem:[%s220 + $0x18] sm:$0xff]
      %v233 = vpack.c.bf16 %v230, %v229
      %v234 = vpack.c.bf16 %v232, %v231
      %v235 = vld [vmem:[%s1] sm:$0xf]
      %v236 = vld [vmem:[%s1 + $0x4] sm:$0xf]
      %v237 = vld [vmem:[%s1 + $0x8] sm:$0xf]
      %v238 = vld [vmem:[%s1 + $0xc] sm:$0xf]
      %v239 = vld [vmem:[%s2] sm:$0x1]
      %v241 = vlaneseq
      %v242 = vshrl.u32 %v241, 7
      %v243 = vsub.s32 0, %v242
      %v244 = vrot.slane %v239, %v243
      %v250 = vunpack.c.l.b16 %v235
      %v251 = vunpack.c.l.b16 %v236
      %v252 = vunpack.c.l.b16 %v237
      %v253 = vunpack.c.l.b16 %v238
      %v254 = vpack.c.b16 %v251, %v250
      %v255 = vpack.c.b16 %v253, %v252
      %vm258 = vcmask 261120
      %v260 = vsel %vm258, %v233, 0
      %v263 = vsel %vm258, %v234, 0
      %265 = vmatprep.subr.bf16.mxu0 0
      %266 = vmatpush1.bf16.msra.mxu0 0
      %267 = vmatprep.subr.bf16.mxu0 0
      %268 = vmatpush1.bf16.msra.mxu0 0
      %269 = vmatprep.subr.bf16.mxu0 0
      %270 = vmatpush1.bf16.msra.mxu0 0
      %271 = vmatprep.subr.bf16.mxu0 0
      %272 = vmatpush1.bf16.msra.mxu0 0
      %273 = vmatprep.subr.bf16.mxu0 0
      %274 = vmatpush1.bf16.msra.mxu0 0
      %275 = vmatprep.subr.bf16.mxu0 0
      %276 = vmatpush1.bf16.msra.mxu0 0
      %277 = vmatprep.subr.bf16.mxu0 0
      %278 = vmatpush1.bf16.msra.mxu0 %v255
      %279 = vmatprep.subr.bf16.mxu0 0
      %280 = vmatpush1.bf16.msra.mxu0 %v254
      %281 = vmatprep.subr.bf16.mxu0 0
      %282 = vmatpush2.bf16.msra.mxu0 0
      %283 = vmatprep.subr.bf16.mxu0 0
      %284 = vmatpush2.bf16.msra.mxu0 0
      %285 = vmatprep.subr.bf16.mxu0 0
      %286 = vmatpush2.bf16.msra.mxu0 0
      %287 = vmatprep.subr.bf16.mxu0 0
      %288 = vmatpush2.bf16.msra.mxu0 0
      %289 = vmatprep.subr.bf16.mxu0 0
      %290 = vmatpush2.bf16.msra.mxu0 0
      %291 = vmatprep.subr.bf16.mxu0 0
      %292 = vmatpush2.bf16.msra.mxu0 0
      %293 = vmatprep.subr.bf16.mxu0 0
      %294 = vmatpush2.bf16.msra.mxu0 0
      %295 = vmatprep.subr.bf16.mxu0 0
      %296 = vmatpush2.bf16.msra.mxu0 0
      %297 = vmatprep.mubr.bf16.mxu0 0
      %298 = vmatmul.mubr.bf16.gmra.mxu0 %v260
      %v299 = vpop.f32.mrf.mxu0
      %v300 = vadd.f32 %v244, %v299
      %v301 = vpop.f32.mrf.mxu0
      %v302 = vpop.f32.mrf.mxu0
      %v303 = vadd.f32 %v244, %v302
      %v304 = vpop.f32.mrf.mxu0
      %305 = vmatprep.mubr.bf16.mxu0 0
      %306 = vmatmul.mubr.bf16.gmra.mxu0 %v263
      %v307 = vpop.f32.mrf.mxu0
      %v308 = vadd.f32 %v244, %v307
      %v309 = vpop.f32.mrf.mxu0
      %v310 = vpop.f32.mrf.mxu0
      %v311 = vadd.f32 %v244, %v310
      %v312 = vpop.f32.mrf.mxu0
      %313 = vdwg.mxu0
      %v314 = vmax.f32 %v300, 0.0
      %v315 = vmax.f32 %v303, 0.0
      %v316 = vmax.f32 %v308, 0.0
      %v317 = vmax.f32 %v311, 0.0
      %v318 = vpack.c.bf16 %v315, %v314
      %v319 = vpack.c.bf16 %v317, %v316
      %v320 = vld [vmem:[%s3] sm:$0xf]
      %v321 = vld [vmem:[%s3 + $0x4] sm:$0xf]
      %v322 = vld [vmem:[%s4] sm:$0x1]
      %v324 = vlaneseq
      %v325 = vshrl.u32 %v324, 7
      %v326 = vsub.s32 0, %v325
      %v327 = vrot.slane %v322, %v326
      %v331 = vunpack.c.l.b16 %v320
      %v332 = vunpack.c.l.b16 %v321
      %v333 = vpack.c.b16 %v332, %v331
      %vm335 = vcmask 130048
      %v337 = vsel %vm335, %v318, 0
      %v340 = vsel %vm335, %v319, 0
      %342 = vmatprep.subr.bf16.mxu0 0
      %343 = vmatpush1.bf16.msra.mxu0 0
      %344 = vmatprep.subr.bf16.mxu0 0
      %345 = vmatpush1.bf16.msra.mxu0 0
      %346 = vmatprep.subr.bf16.mxu0 0
      %347 = vmatpush1.bf16.msra.mxu0 0
      %348 = vmatprep.subr.bf16.mxu0 0
      %349 = vmatpush1.bf16.msra.mxu0 0
      %350 = vmatprep.subr.bf16.mxu0 0
      %351 = vmatpush1.bf16.msra.mxu0 0
      %352 = vmatprep.subr.bf16.mxu0 0
      %353 = vmatpush1.bf16.msra.mxu0 0
      %354 = vmatprep.subr.bf16.mxu0 0
      %355 = vmatpush1.bf16.msra.mxu0 0
      %356 = vmatprep.subr.bf16.mxu0 0
      %357 = vmatpush1.bf16.msra.mxu0 %v333
      %358 = vmatprep.subr.bf16.mxu0 0
      %359 = vmatpush2.bf16.msra.mxu0 0
      %360 = vmatprep.subr.bf16.mxu0 0
      %361 = vmatpush2.bf16.msra.mxu0 0
      %362 = vmatprep.subr.bf16.mxu0 0
      %363 = vmatpush2.bf16.msra.mxu0 0
      %364 = vmatprep.subr.bf16.mxu0 0
      %365 = vmatpush2.bf16.msra.mxu0 0
      %366 = vmatprep.subr.bf16.mxu0 0
      %367 = vmatpush2.bf16.msra.mxu0 0
      %368 = vmatprep.subr.bf16.mxu0 0
      %369 = vmatpush2.bf16.msra.mxu0 0
      %370 = vmatprep.subr.bf16.mxu0 0
      %371 = vmatpush2.bf16.msra.mxu0 0
      %372 = vmatprep.subr.bf16.mxu0 0
      %373 = vmatpush2.bf16.msra.mxu0 0
      %374 = vmatprep.mubr.bf16.mxu0 0
      %375 = vmatmul.mubr.bf16.gmra.mxu0 %v337
      %v376 = vpop.f32.mrf.mxu0
      %v377 = vadd.f32 %v327, %v376
      %v378 = vpop.f32.mrf.mxu0
      %v379 = vpop.f32.mrf.mxu0
      %v380 = vadd.f32 %v327, %v379
      %v381 = vpop.f32.mrf.mxu0
      %382 = vmatprep.mubr.bf16.mxu0 0
      %383 = vmatmul.mubr.bf16.gmra.mxu0 %v340
      %v384 = vpop.f32.mrf.mxu0
      %v385 = vadd.f32 %v327, %v384
      %v386 = vpop.f32.mrf.mxu0
      %v387 = vpop.f32.mrf.mxu0
      %v388 = vadd.f32 %v327, %v387
      %v389 = vpop.f32.mrf.mxu0
      %390 = vdwg.mxu0
      %vm391 = vcmask 64512
      %392 = vst.msk [vmem:[%s226] sm:$0xff] %vm391, %v377
      %393 = vst.msk [vmem:[%s226 + $0x8] sm:$0xff] %vm391, %v380
      %394 = vst.msk [vmem:[%s226 + $0x10] sm:$0xff] %vm391, %v385
      %395 = vst.msk [vmem:[%s226 + $0x18] sm:$0xff] %vm391, %v388
      %s396 = smul.u32 4, %s16
      %p397 = scmp.lt.s32.totalorder %s396, 31
      %s398 = scalar_select %p397, %s396, 31
      %s399 = smul.addr %s398, 8
      %s400 = scalar_lea.vmem %s5, %s399
      // Predicated region
      $region41: #{tpu_custom_call.1} parent=39 // pred_check
        %p401 = pneg %p144
      $region42: #{tpu_custom_call.1} parent=39 // pred_check_branch
        %403 = sbr.rel (%p401) target = $region44
      $region43: #{tpu_custom_call.1} parent=39 // pred_region
        %s404 = smul.u32 4, %s16
      $region44: #{tpu_custom_call.1} parent=39 // pred_fallthru
        _
    $region40: #{tpu_custom_call.1} parent=5 // pred_fallthru
      _
    %p405 = scmp.le.s32.totalorder 2, %s11
    // Predicated region
    $region45: #{tpu_custom_call.1} parent=5 // pred_check
      %p406 = pneg %p405
    $region46: #{tpu_custom_call.1} parent=5 // pred_check_branch
      %408 = sbr.rel (%p406) target = $region48
    $region47: #{tpu_custom_call.1} parent=5 // pred_region
      %s409 = ssub.s32 %s11, 2
      // Predicated region
      $region49: #{tpu_custom_call.1} parent=47 // pred_check
        %p410 = pneg %p150
      $region50: #{tpu_custom_call.1} parent=47 // pred_check_branch
        %412 = sbr.rel (%p410) target = $region52
      $region51: #{tpu_custom_call.1} parent=47 // pred_region
        %s413 = smul.u32 4, %s17
        %p414 = scmp.lt.s32.totalorder %s413, 31
        %s415 = scalar_select %p414, %s413, 31
        %s416 = smul.addr %s415, 8
        %s417 = scalar_lea.vmem %s5, %s416
      $region52: #{tpu_custom_call.1} parent=47 // pred_fallthru
        _
    $region48: #{tpu_custom_call.1} parent=5 // pred_fallthru
      _
  $region6: #{tpu_custom_call.1} parent=0 // loop_footer
    %s15 = sadd.s32 1, %s11
  $region7: #{tpu_custom_call.1} parent=0 // loop_footer_branch
    %10 = sbr.rel target = $region3
  $region8: #{tpu_custom_call.1} parent=0 // loop_exit
    _

</llo_original>
